<compile_context>
chip_gen: v5e
topology: v5e:2x2
jax: 0.10.0
libtpu: 0.0.40
codegen_flags: <defaults>
</compile_context>

<pallas_src>
import functools

import jax
import jax.numpy as jnp
from jax.experimental import pallas as pl

HIDDEN = 128            # trunk / head hidden width (nn.Linear(., 128))
HEAD_FUSED = 2 * HIDDEN  # value-hidden || adv-hidden (fills 256-wide MXU)
OUT_PAD = 128            # lane-dense padded output width


def _dueling_kernel(ac,
                    x_ref,
                    w1_ref, b1_ref,
                    w2_ref, b2_ref,
                    wh1_ref, bh1_ref,
                    wh2_ref, bh2_ref,
                    q_ref):
    # Shared trunk: Linear(obs,128) -> ReLU -> Linear(128,128) -> ReLU
    x = x_ref[...]  # (B, obs) bf16
    h = jnp.dot(x, w1_ref[...], preferred_element_type=jnp.float32) + b1_ref[...]
    h = jnp.maximum(h, 0.0).astype(jnp.bfloat16)
    h = jnp.dot(h, w2_ref[...], preferred_element_type=jnp.float32) + b2_ref[...]
    h = jnp.maximum(h, 0.0).astype(jnp.bfloat16)

    # Fused head layer 1: [wv1 || wa1] -> single (128, 256) matmul + ReLU.
    hva = jnp.dot(h, wh1_ref[...], preferred_element_type=jnp.float32) + bh1_ref[...]
    hva = jnp.maximum(hva, 0.0).astype(jnp.bfloat16)

    # Fused head layer 2: block-diagonal (256, OUT_PAD) weight.
    #   cols [0:ac]  -> advantages, col ac -> value, cols [ac+1:] -> exact zeros
    va = jnp.dot(hva, wh2_ref[...], preferred_element_type=jnp.float32) + bh2_ref[...]

    batch = va.shape[0]
    v = va[:, ac:ac + 1]  # (B, 1) value column

    # Global mean over ALL advantage entries (matches torch adv.mean()).
    # Padded columns are exactly zero, so sum(va) = sum(adv) + sum(v).
    adv_mean = (jnp.sum(va) - jnp.sum(v)) / jnp.float32(batch * ac)

    # q = value + (adv - adv_mean). Columns >= ac hold don't-care values that
    # the wrapper slices off -> lane-dense (B, 128) unmasked store.
    q_ref[...] = va + (v - adv_mean)


def pack_params(params):
    """Pack PyTorch-style f32 params into fused bf16 weights + f32 biases."""
    (w1, b1, w2, b2, wv1, bv1, wv2, bv2, wa1, ba1, wa2, ba2) = params
    ac = wa2.shape[1]
    assert ac + 1 <= OUT_PAD

    wh1 = jnp.concatenate([wv1, wa1], axis=1)   # (128, 256)
    bh1 = jnp.concatenate([bv1, ba1], axis=1)   # (1, 256)

    wh2 = jnp.zeros((HEAD_FUSED, OUT_PAD), jnp.float32)
    wh2 = wh2.at[:HIDDEN, ac:ac + 1].set(wv2)   # value column from value-hidden rows
    wh2 = wh2.at[HIDDEN:, :ac].set(wa2)         # adv columns from adv-hidden rows
    bh2 = jnp.zeros((1, OUT_PAD), jnp.float32)
    bh2 = bh2.at[:, ac:ac + 1].set(bv2)
    bh2 = bh2.at[:, :ac].set(ba2)

    bf16 = lambda t: t.astype(jnp.bfloat16)
    packed = (bf16(w1), b1, bf16(w2), b2, bf16(wh1), bh1, bf16(wh2), bh2)
    return packed, ac


@functools.partial(jax.jit, static_argnames=("ac",))
def dueling_forward(x, packed, ac):
    batch = x.shape[0]
    x = x.astype(jnp.bfloat16)
    operands = (x,) + tuple(packed)

    def full_spec(arr):
        # Full-array block (block_shape == array shape satisfies the (8,128) rule).
        return pl.BlockSpec(arr.shape, lambda _shape=arr.shape: (0,) * len(_shape))

    q_pad = pl.pallas_call(
        functools.partial(_dueling_kernel, ac),
        out_shape=jax.ShapeDtypeStruct((batch, OUT_PAD), jnp.float32),
        grid=(),
        in_specs=[full_spec(op) for op in operands],
        out_specs=pl.BlockSpec((batch, OUT_PAD), lambda: (0, 0)),
    )(*operands)
    return q_pad[:, :ac]


def init_params(key, obs, ac):
    """PyTorch nn.Linear-style init: U(-1/sqrt(fan_in), 1/sqrt(fan_in))."""
    def linear(k, fan_in, fan_out):
        kw, kb = jax.random.split(k)
        bound = 1.0 / jnp.sqrt(jnp.float32(fan_in))
        w = jax.random.uniform(kw, (fan_in, fan_out), jnp.float32, -bound, bound)
        b = jax.random.uniform(kb, (1, fan_out), jnp.float32, -bound, bound)
        return w, b

    keys = jax.random.split(key, 6)
    w1, b1 = linear(keys[0], obs, HIDDEN)
    w2, b2 = linear(keys[1], HIDDEN, HIDDEN)
    wv1, bv1 = linear(keys[2], HIDDEN, HIDDEN)
    wv2, bv2 = linear(keys[3], HIDDEN, 1)
    wa1, ba1 = linear(keys[4], HIDDEN, HIDDEN)
    wa2, ba2 = linear(keys[5], HIDDEN, ac)
    return (w1, b1, w2, b2, wv1, bv1, wv2, bv2, wa1, ba1, wa2, ba2)


def reference_forward(x, params):
    """Plain-JAX mirror of the kernel's bf16/f32-accum compute path."""
    (w1, b1, w2, b2, wv1, bv1, wv2, bv2, wa1, ba1, wa2, ba2) = params
    bf = lambda t: t.astype(jnp.bfloat16)
    xb = bf(x)
    h = jnp.maximum(jnp.dot(xb, bf(w1), preferred_element_type=jnp.float32) + b1, 0.0)
    h = bf(h)
    h = jnp.maximum(jnp.dot(h, bf(w2), preferred_element_type=jnp.float32) + b2, 0.0)
    h = bf(h)
    vh = jnp.maximum(jnp.dot(h, bf(wv1), preferred_element_type=jnp.float32) + bv1, 0.0)
    ah = jnp.maximum(jnp.dot(h, bf(wa1), preferred_element_type=jnp.float32) + ba1, 0.0)
    v = jnp.dot(bf(vh), bf(wv2), preferred_element_type=jnp.float32) + bv2
    a = jnp.dot(bf(ah), bf(wa2), preferred_element_type=jnp.float32) + ba2
    return v + (a - jnp.mean(a))   # global mean, as in the PyTorch module


if __name__ == "__main__":
    # LunarLander-Discrete-like sizes; batch=128 amortizes launch/DMA overhead
    # and fills the f32 sublane tile.
    obs, ac, batch = 8, 4, 128

    key = jax.random.PRNGKey(0)
    kx, kp = jax.random.split(key)
    x = jax.random.normal(kx, (batch, obs), jnp.float32)
    params = init_params(kp, obs, ac)

    packed, ac_static = pack_params(params)   # one-time packing / bf16 cast

    q = dueling_forward(x, packed, ac_static)
    q = jax.block_until_ready(q)

    q_ref = reference_forward(x, params)
    assert q.shape == (batch, ac)
    assert jnp.allclose(q, q_ref, atol=1e-3, rtol=1e-3)

    print("KERNEL_OK")
</pallas_src>

<mosaic_0001>
module attributes {stable_mosaic.version = 11 : i64} {
  func.func @_dueling_kernel(%arg0: memref<128x8xbf16, #tpu.memory_space<vmem>>, %arg1: memref<8x128xbf16, #tpu.memory_space<vmem>>, %arg2: memref<1x128xf32, #tpu.memory_space<vmem>>, %arg3: memref<128x128xbf16, #tpu.memory_space<vmem>>, %arg4: memref<1x128xf32, #tpu.memory_space<vmem>>, %arg5: memref<128x256xbf16, #tpu.memory_space<vmem>>, %arg6: memref<1x256xf32, #tpu.memory_space<vmem>>, %arg7: memref<256x128xbf16, #tpu.memory_space<vmem>>, %arg8: memref<1x128xf32, #tpu.memory_space<vmem>>, %arg9: memref<128x128xf32, #tpu.memory_space<vmem>>) attributes {dimension_semantics = [], scalar_prefetch = 0 : i64, scratch_operands = 0 : i64, tpu.core_type = #tpu.core_type<tc>} {
    %c0 = arith.constant 0 : index
    %c0_0 = arith.constant 0 : index
    %0 = vector.load %arg0[%c0, %c0_0] : memref<128x8xbf16, #tpu.memory_space<vmem>>, vector<128x8xbf16>
    %c0_1 = arith.constant 0 : index
    %c0_2 = arith.constant 0 : index
    %1 = vector.load %arg1[%c0_1, %c0_2] : memref<8x128xbf16, #tpu.memory_space<vmem>>, vector<8x128xbf16>
    %cst = arith.constant dense<0.000000e+00> : vector<128x128xf32>
    %2 = tpu.matmul %0, %1, %cst {dimension_numbers = #tpu.dot_dimension_numbers<[1], [0], [0], [1], [0, 0, 1, 1], [], []>} : vector<128x8xbf16>, vector<8x128xbf16>, vector<128x128xf32> -> vector<128x128xf32>
    %c0_3 = arith.constant 0 : index
    %c0_4 = arith.constant 0 : index
    %3 = vector.load %arg2[%c0_3, %c0_4] : memref<1x128xf32, #tpu.memory_space<vmem>>, vector<1x128xf32>
    %4 = vector.broadcast %3 : vector<1x128xf32> to vector<128x128xf32>
    %5 = arith.addf %2, %4 : vector<128x128xf32>
    %cst_5 = arith.constant 0.000000e+00 : f32
    %6 = vector.broadcast %cst_5 : f32 to vector<128x128xf32>
    %7 = arith.maximumf %5, %6 : vector<128x128xf32>
    %8 = arith.truncf %7 : vector<128x128xf32> to vector<128x128xbf16>
    %c0_6 = arith.constant 0 : index
    %c0_7 = arith.constant 0 : index
    %9 = vector.load %arg3[%c0_6, %c0_7] : memref<128x128xbf16, #tpu.memory_space<vmem>>, vector<128x128xbf16>
    %cst_8 = arith.constant dense<0.000000e+00> : vector<128x128xf32>
    %10 = tpu.matmul %8, %9, %cst_8 {dimension_numbers = #tpu.dot_dimension_numbers<[1], [0], [0], [1], [0, 0, 1, 1], [], []>} : vector<128x128xbf16>, vector<128x128xbf16>, vector<128x128xf32> -> vector<128x128xf32>
    %c0_9 = arith.constant 0 : index
    %c0_10 = arith.constant 0 : index
    %11 = vector.load %arg4[%c0_9, %c0_10] : memref<1x128xf32, #tpu.memory_space<vmem>>, vector<1x128xf32>
    %12 = vector.broadcast %11 : vector<1x128xf32> to vector<128x128xf32>
    %13 = arith.addf %10, %12 : vector<128x128xf32>
    %cst_11 = arith.constant 0.000000e+00 : f32
    %14 = vector.broadcast %cst_11 : f32 to vector<128x128xf32>
    %15 = arith.maximumf %13, %14 : vector<128x128xf32>
    %16 = arith.truncf %15 : vector<128x128xf32> to vector<128x128xbf16>
    %c0_12 = arith.constant 0 : index
    %c0_13 = arith.constant 0 : index
    %17 = vector.load %arg5[%c0_12, %c0_13] : memref<128x256xbf16, #tpu.memory_space<vmem>>, vector<128x256xbf16>
    %cst_14 = arith.constant dense<0.000000e+00> : vector<128x256xf32>
    %18 = tpu.matmul %16, %17, %cst_14 {dimension_numbers = #tpu.dot_dimension_numbers<[1], [0], [0], [1], [0, 0, 1, 1], [], []>} : vector<128x128xbf16>, vector<128x256xbf16>, vector<128x256xf32> -> vector<128x256xf32>
    %c0_15 = arith.constant 0 : index
    %c0_16 = arith.constant 0 : index
    %19 = vector.load %arg6[%c0_15, %c0_16] : memref<1x256xf32, #tpu.memory_space<vmem>>, vector<1x256xf32>
    %20 = vector.broadcast %19 : vector<1x256xf32> to vector<128x256xf32>
    %21 = arith.addf %18, %20 : vector<128x256xf32>
    %cst_17 = arith.constant 0.000000e+00 : f32
    %22 = vector.broadcast %cst_17 : f32 to vector<128x256xf32>
    %23 = arith.maximumf %21, %22 : vector<128x256xf32>
    %24 = arith.truncf %23 : vector<128x256xf32> to vector<128x256xbf16>
    %c0_18 = arith.constant 0 : index
    %c0_19 = arith.constant 0 : index
    %25 = vector.load %arg7[%c0_18, %c0_19] : memref<256x128xbf16, #tpu.memory_space<vmem>>, vector<256x128xbf16>
    %cst_20 = arith.constant dense<0.000000e+00> : vector<128x128xf32>
    %26 = tpu.matmul %24, %25, %cst_20 {dimension_numbers = #tpu.dot_dimension_numbers<[1], [0], [0], [1], [0, 0, 1, 1], [], []>} : vector<128x256xbf16>, vector<256x128xbf16>, vector<128x128xf32> -> vector<128x128xf32>
    %c0_21 = arith.constant 0 : index
    %c0_22 = arith.constant 0 : index
    %27 = vector.load %arg8[%c0_21, %c0_22] : memref<1x128xf32, #tpu.memory_space<vmem>>, vector<1x128xf32>
    %28 = vector.broadcast %27 : vector<1x128xf32> to vector<128x128xf32>
    %29 = arith.addf %26, %28 : vector<128x128xf32>
    %30 = vector.extract_strided_slice %29 {offsets = [0, 4], sizes = [128, 1], strides = [1, 1]} : vector<128x128xf32> to vector<128x1xf32>
    %31 = vector.shape_cast %29 : vector<128x128xf32> to vector<1x128x128xf32>
    %cst_23 = arith.constant dense<0.000000e+00> : vector<1xf32>
    %32 = vector.multi_reduction <add>, %31, %cst_23 [1, 2] : vector<1x128x128xf32> to vector<1xf32>
    %33 = vector.shape_cast %32 : vector<1xf32> to vector<1x1x1xf32>
    %34 = vector.extract %33[0, 0, 0] : f32 from vector<1x1x1xf32>
    %35 = vector.shape_cast %30 : vector<128x1xf32> to vector<1x128x1xf32>
    %cst_24 = arith.constant dense<0.000000e+00> : vector<1xf32>
    %36 = vector.multi_reduction <add>, %35, %cst_24 [1, 2] : vector<1x128x1xf32> to vector<1xf32>
    %37 = vector.shape_cast %36 : vector<1xf32> to vector<1x1x1xf32>
    %38 = vector.extract %37[0, 0, 0] : f32 from vector<1x1x1xf32>
    %39 = arith.subf %34, %38 : f32
    %cst_25 = arith.constant 5.120000e+02 : f32
    %40 = arith.divf %39, %cst_25 : f32
    %41 = vector.broadcast %40 : f32 to vector<128x1xf32>
    %42 = arith.subf %30, %41 : vector<128x1xf32>
    %43 = vector.broadcast %42 : vector<128x1xf32> to vector<128x128xf32>
    %44 = arith.addf %29, %43 : vector<128x128xf32>
    %c0_26 = arith.constant 0 : index
    %c0_27 = arith.constant 0 : index
    %45 = vector.load %arg9[%c0_26, %c0_27] : memref<128x128xf32, #tpu.memory_space<vmem>>, vector<128x128xf32>
    tpu.vector_store %arg9[%c0_26, %c0_27], %44 {strides = array<i32>} : memref<128x128xf32, #tpu.memory_space<vmem>>, vector<128x128xf32>,
    return
  }
}

</mosaic_0001>

<llo_original>
// kernel: dueling_forward.1
$region0: #{dueling_forward.1}
  #allocation0 [shape = 'u32[]', space=smem, size = 0x4, offset = 0x4, fixed_abs, tag = 'smem constant byte address 0x4 - core index']
  #allocation1 [shape = 'u32[72,128]{1,0:T(1,128)}', space=vmem, size = 0x9000, scoped, tag = 'internal scratch']
  %s0 = inlined_call_operand.vmem [shape: bf16[128,8], index: 0, kind: input, shape index: {}]
  %s1 = inlined_call_operand.vmem [shape: bf16[8,128], index: 1, kind: input, shape index: {}]
  %s2 = inlined_call_operand.vmem [shape: f32[1,128], index: 2, kind: input, shape index: {}]
  %s3 = inlined_call_operand.vmem [shape: bf16[128,128], index: 3, kind: input, shape index: {}]
  %s4 = inlined_call_operand.vmem [shape: f32[1,128], index: 4, kind: input, shape index: {}]
  %s5 = inlined_call_operand.hbm [shape: bf16[128,256], index: 5, kind: input, shape index: {}]
  %s6 = inlined_call_operand.vmem [shape: f32[1,256], index: 6, kind: input, shape index: {}]
  %s7 = inlined_call_operand.hbm [shape: bf16[256,128], index: 7, kind: input, shape index: {}]
  %s8 = inlined_call_operand.vmem [shape: f32[1,128], index: 8, kind: input, shape index: {}]
  %s9 = inlined_call_operand.vmem [shape: f32[128,128], index: 9, kind: output, shape index: {}]
  %s10 = sld [smem:[#allocation0]]
  $region54: #{dueling_forward.1} parent=0
    _
  %s12 = ssub.s32 1, %s10
  %s13 = scalar_select 0, %s12, %s10
  $region1: #{dueling_forward.1} parent=0
    #allocation2 [shape = 'u8[65536]{0}', space=vmem, size = 0x10000, scoped, tag = 'input window, operand 5, single buffered']
    #allocation3 [shape = 's32[1]{0}', space=sflag, size = 0x4, scoped, tag = 'scoped memory for dueling_forward.1']
    #allocation4 [shape = 'u8[65536]{0}', space=vmem, size = 0x10000, scoped, tag = 'input window, operand 7, single buffered']
    #allocation5 [shape = 's32[1]{0}', space=sflag, size = 0x4, scoped, tag = 'scoped memory for dueling_forward.1']
    %14 = vsyncpa [#allocation3], 0
    %15 = vsyncpa [#allocation5], 0
    // Predicated region
    $region2: #{dueling_forward.1} parent=1 // pred_check
      _
    $region3: #{dueling_forward.1} parent=1 // pred_check_branch
      %17 = sbr.rel (0) target = $region5
    $region4: #{dueling_forward.1} parent=1 // pred_region
      _
    $region5: #{dueling_forward.1} parent=1 // pred_fallthru
      _
    // Predicated region
    $region6: #{dueling_forward.1} parent=1 // pred_check
      _
    $region7: #{dueling_forward.1} parent=1 // pred_check_branch
      %19 = sbr.rel (0) target = $region9
    $region8: #{dueling_forward.1} parent=1 // pred_region
      _
    $region9: #{dueling_forward.1} parent=1 // pred_fallthru
      _
    // Predicated region
    $region10: #{dueling_forward.1} parent=1 // pred_check
      _
    $region11: #{dueling_forward.1} parent=1 // pred_check_branch
      %21 = sbr.rel (0) target = $region13
    $region12: #{dueling_forward.1} parent=1 // pred_region
      _
    $region13: #{dueling_forward.1} parent=1 // pred_fallthru
      _
    // Predicated region
    $region14: #{dueling_forward.1} parent=1 // pred_check
      _
    $region15: #{dueling_forward.1} parent=1 // pred_check_branch
      %23 = sbr.rel (0) target = $region17
    $region16: #{dueling_forward.1} parent=1 // pred_region
      _
    $region17: #{dueling_forward.1} parent=1 // pred_fallthru
      _
    // Predicated region
    $region18: #{dueling_forward.1} parent=1 // pred_check
      _
    $region19: #{dueling_forward.1} parent=1 // pred_check_branch
      %25 = sbr.rel (0) target = $region21
    $region20: #{dueling_forward.1} parent=1 // pred_region
      _
    $region21: #{dueling_forward.1} parent=1 // pred_fallthru
      _
    // Predicated region
    $region22: #{dueling_forward.1} parent=1 // pred_check
      _
    $region23: #{dueling_forward.1} parent=1 // pred_check_branch
      %27 = sbr.rel (0) target = $region25
    $region24: #{dueling_forward.1} parent=1 // pred_region
      %29 = vsyncadd [#allocation3], 0
      %s30 = sshll.u32 %s5, 4
      %s31 = int_to_ptr.hbm [resolvable:$true] %s30
      %s32 = sshll.u32 [#allocation2], 4
      %s33 = int_to_ptr.vmem [resolvable:$true] %s32
      %38 = dma.hbm_to_vmem [thread:$0]  %s31, 2048, %s33, [#allocation3], 128, 128, 8
    $region25: #{dueling_forward.1} parent=1 // pred_fallthru
      _
    // Predicated region
    $region26: #{dueling_forward.1} parent=1 // pred_check
      _
    $region27: #{dueling_forward.1} parent=1 // pred_check_branch
      %40 = sbr.rel (0) target = $region29
    $region28: #{dueling_forward.1} parent=1 // pred_region
      _
    $region29: #{dueling_forward.1} parent=1 // pred_fallthru
      _
    // Predicated region
    $region30: #{dueling_forward.1} parent=1 // pred_check
      _
    $region31: #{dueling_forward.1} parent=1 // pred_check_branch
      %42 = sbr.rel (0) target = $region33
    $region32: #{dueling_forward.1} parent=1 // pred_region
      %44 = vsyncadd [#allocation5], 0
      %s45 = sshll.u32 %s7, 4
      %s46 = int_to_ptr.hbm [resolvable:$true] %s45
      %s47 = sshll.u32 [#allocation4], 4
      %s48 = int_to_ptr.vmem [resolvable:$true] %s47
      %53 = dma.hbm_to_vmem [thread:$0]  %s46, 2048, %s48, [#allocation5], 64, 64, 4
    $region33: #{dueling_forward.1} parent=1 // pred_fallthru
      _
    // Predicated region
    $region34: #{dueling_forward.1} parent=1 // pred_check
      _
    $region35: #{dueling_forward.1} parent=1 // pred_check_branch
      %55 = sbr.rel (0) target = $region37
    $region36: #{dueling_forward.1} parent=1 // pred_region
      _
    $region37: #{dueling_forward.1} parent=1 // pred_fallthru
      _
    // Predicated region
    $region38: #{dueling_forward.1} parent=1 // pred_check
      _
    $region39: #{dueling_forward.1} parent=1 // pred_check_branch
      %57 = sbr.rel (0) target = $region41
    $region40: #{dueling_forward.1} parent=1 // pred_region
      %59 = dma.done [#allocation3], 2048
    $region41: #{dueling_forward.1} parent=1 // pred_fallthru
      _
    // Predicated region
    $region42: #{dueling_forward.1} parent=1 // pred_check
      _
    $region43: #{dueling_forward.1} parent=1 // pred_check_branch
      %61 = sbr.rel (0) target = $region45
    $region44: #{dueling_forward.1} parent=1 // pred_region
      %63 = dma.done [#allocation5], 2048
    $region45: #{dueling_forward.1} parent=1 // pred_fallthru
      _
    %v65 = vld [vmem:[%s0] sm:$0xf]
    %v66 = vld [vmem:[%s0 + $0x4] sm:$0xf]
    %v67 = vld [vmem:[%s0 + $0x8] sm:$0xf]
    %v68 = vld [vmem:[%s0 + $0xc] sm:$0xf]
    %v69 = vld [vmem:[%s0 + $0x10] sm:$0xf]
    %v70 = vld [vmem:[%s0 + $0x14] sm:$0xf]
    %v71 = vld [vmem:[%s0 + $0x18] sm:$0xf]
    %v72 = vld [vmem:[%s0 + $0x1c] sm:$0xf]
    %v73 = vld [vmem:[%s0 + $0x20] sm:$0xf]
    %v74 = vld [vmem:[%s0 + $0x24] sm:$0xf]
    %v75 = vld [vmem:[%s0 + $0x28] sm:$0xf]
    %v76 = vld [vmem:[%s0 + $0x2c] sm:$0xf]
    %v77 = vld [vmem:[%s0 + $0x30] sm:$0xf]
    %v78 = vld [vmem:[%s0 + $0x34] sm:$0xf]
    %v79 = vld [vmem:[%s0 + $0x38] sm:$0xf]
    %v80 = vld [vmem:[%s0 + $0x3c] sm:$0xf]
    %v81 = vld [vmem:[%s1] sm:$0xf]
    %v82 = vld [vmem:[%s2] sm:$0x1]
    %v84 = vperm.slane %v82, 0
    %v102 = vunpack.c.l.b16 %v65
    %v103 = vunpack.c.l.b16 %v66
    %v104 = vunpack.c.l.b16 %v67
    %v105 = vunpack.c.l.b16 %v68
    %v106 = vunpack.c.l.b16 %v69
    %v107 = vunpack.c.l.b16 %v70
    %v108 = vunpack.c.l.b16 %v71
    %v109 = vunpack.c.l.b16 %v72
    %v110 = vunpack.c.l.b16 %v73
    %v111 = vunpack.c.l.b16 %v74
    %v112 = vunpack.c.l.b16 %v75
    %v113 = vunpack.c.l.b16 %v76
    %v114 = vunpack.c.l.b16 %v77
    %v115 = vunpack.c.l.b16 %v78
    %v116 = vunpack.c.l.b16 %v79
    %v117 = vunpack.c.l.b16 %v80
    %v118 = vpack.c.b16 %v103, %v102
    %v119 = vpack.c.b16 %v105, %v104
    %v120 = vpack.c.b16 %v107, %v106
    %v121 = vpack.c.b16 %v109, %v108
    %v122 = vpack.c.b16 %v111, %v110
    %v123 = vpack.c.b16 %v113, %v112
    %v124 = vpack.c.b16 %v115, %v114
    %v125 = vpack.c.b16 %v117, %v116
    %vm126 = vcmask 64512
    %v128 = vsel %vm126, %v118, 0
    %v131 = vsel %vm126, %v119, 0
    %v134 = vsel %vm126, %v120, 0
    %v137 = vsel %vm126, %v121, 0
    %v140 = vsel %vm126, %v122, 0
    %v143 = vsel %vm126, %v123, 0
    %v146 = vsel %vm126, %v124, 0
    %v149 = vsel %vm126, %v125, 0
    %vm151 = vcmask 1043456
    %v153 = vsel %vm151, %v81, 0
    %155 = vmatpush.bf16.msra.mxu0 0
    %156 = vmatpush.bf16.msra.mxu0 0
    %157 = vmatpush.bf16.msra.mxu0 0
    %158 = vmatpush.bf16.msra.mxu0 0
    %159 = vmatpush.bf16.msra.mxu0 0
    %160 = vmatpush.bf16.msra.mxu0 0
    %161 = vmatpush.bf16.msra.mxu0 0
    %162 = vmatpush.bf16.msra.mxu0 %v153
    %163 = vmatmul.bf16.gmra.mxu0 %v128
    %v164 = vpop.f32.mrf.mxu0
    %v165 = vadd.f32 %v84, %v164
    %v166 = vpop.f32.mrf.mxu0
    %v167 = vadd.f32 %v84, %v166
    %168 = vmatmul.bf16.gmra.mxu0 %v131
    %v169 = vpop.f32.mrf.mxu0
    %v170 = vadd.f32 %v84, %v169
    %v171 = vpop.f32.mrf.mxu0
    %v172 = vadd.f32 %v84, %v171
    %173 = vmatmul.bf16.gmra.mxu0 %v134
    %v174 = vpop.f32.mrf.mxu0
    %v175 = vadd.f32 %v84, %v174
    %v176 = vpop.f32.mrf.mxu0
    %v177 = vadd.f32 %v84, %v176
    %178 = vmatmul.bf16.gmra.mxu0 %v137
    %v179 = vpop.f32.mrf.mxu0
    %v180 = vadd.f32 %v84, %v179
    %v181 = vpop.f32.mrf.mxu0
    %v182 = vadd.f32 %v84, %v181
    %183 = vmatmul.bf16.gmra.mxu0 %v140
    %v184 = vpop.f32.mrf.mxu0
    %v185 = vadd.f32 %v84, %v184
    %v186 = vpop.f32.mrf.mxu0
    %v187 = vadd.f32 %v84, %v186
    %188 = vmatmul.bf16.gmra.mxu0 %v143
    %v189 = vpop.f32.mrf.mxu0
    %v190 = vadd.f32 %v84, %v189
    %v191 = vpop.f32.mrf.mxu0
    %v192 = vadd.f32 %v84, %v191
    %193 = vmatmul.bf16.gmra.mxu0 %v146
    %v194 = vpop.f32.mrf.mxu0
    %v195 = vadd.f32 %v84, %v194
    %v196 = vpop.f32.mrf.mxu0
    %v197 = vadd.f32 %v84, %v196
    %198 = vmatmul.bf16.gmra.mxu0 %v149
    %v199 = vpop.f32.mrf.mxu0
    %v200 = vadd.f32 %v84, %v199
    %v201 = vpop.f32.mrf.mxu0
    %v202 = vadd.f32 %v84, %v201
    %203 = vdwg.mxu0
    %v204 = vmax.f32 %v165, 0.0
    %v205 = vmax.f32 %v167, 0.0
    %v206 = vmax.f32 %v170, 0.0
    %v207 = vmax.f32 %v172, 0.0
    %v208 = vmax.f32 %v175, 0.0
    %v209 = vmax.f32 %v177, 0.0
    %v210 = vmax.f32 %v180, 0.0
    %v211 = vmax.f32 %v182, 0.0
    %v212 = vmax.f32 %v185, 0.0
    %v213 = vmax.f32 %v187, 0.0
    %v214 = vmax.f32 %v190, 0.0
    %v215 = vmax.f32 %v192, 0.0
    %v216 = vmax.f32 %v195, 0.0
    %v217 = vmax.f32 %v197, 0.0
    %v218 = vmax.f32 %v200, 0.0
    %v219 = vmax.f32 %v202, 0.0
    %v220 = vpack.c.bf16 %v205, %v204
    %v221 = vpack.c.bf16 %v207, %v206
    %v222 = vpack.c.bf16 %v209, %v208
    %v223 = vpack.c.bf16 %v211, %v210
    %v224 = vpack.c.bf16 %v213, %v212
    %v225 = vpack.c.bf16 %v215, %v214
    %v226 = vpack.c.bf16 %v217, %v216
    %v227 = vpack.c.bf16 %v219, %v218
    %v228 = vld [vmem:[%s3] sm:$0xf]
    %v229 = vld [vmem:[%s3 + $0x4] sm:$0xf]
    %v230 = vld [vmem:[%s3 + $0x8] sm:$0xf]
    %v231 = vld [vmem:[%s3 + $0xc] sm:$0xf]
    %v232 = vld [vmem:[%s3 + $0x10] sm:$0xf]
    %v233 = vld [vmem:[%s3 + $0x14] sm:$0xf]
    %v234 = vld [vmem:[%s3 + $0x18] sm:$0xf]
    %v235 = vld [vmem:[%s3 + $0x1c] sm:$0xf]
    %v236 = vld [vmem:[%s3 + $0x20] sm:$0xf]
    %v237 = vld [vmem:[%s3 + $0x24] sm:$0xf]
    %v238 = vld [vmem:[%s3 + $0x28] sm:$0xf]
    %v239 = vld [vmem:[%s3 + $0x2c] sm:$0xf]
    %v240 = vld [vmem:[%s3 + $0x30] sm:$0xf]
    %v241 = vld [vmem:[%s3 + $0x34] sm:$0xf]
    %v242 = vld [vmem:[%s3 + $0x38] sm:$0xf]
    %v243 = vld [vmem:[%s3 + $0x3c] sm:$0xf]
    %v244 = vld [vmem:[%s4] sm:$0x1]
    %v246 = vperm.slane %v244, 0
    %v264 = vunpack.c.l.b16 %v228
    %v265 = vunpack.c.l.b16 %v229
    %v266 = vunpack.c.l.b16 %v230
    %v267 = vunpack.c.l.b16 %v231
    %v268 = vunpack.c.l.b16 %v232
    %v269 = vunpack.c.l.b16 %v233
    %v270 = vunpack.c.l.b16 %v234
    %v271 = vunpack.c.l.b16 %v235
    %v272 = vunpack.c.l.b16 %v236
    %v273 = vunpack.c.l.b16 %v237
    %v274 = vunpack.c.l.b16 %v238
    %v275 = vunpack.c.l.b16 %v239
    %v276 = vunpack.c.l.b16 %v240
    %v277 = vunpack.c.l.b16 %v241
    %v278 = vunpack.c.l.b16 %v242
    %v279 = vunpack.c.l.b16 %v243
    %v280 = vpack.c.b16 %v265, %v264
    %v281 = vpack.c.b16 %v267, %v266
    %v282 = vpack.c.b16 %v269, %v268
    %v283 = vpack.c.b16 %v271, %v270
    %v284 = vpack.c.b16 %v273, %v272
    %v285 = vpack.c.b16 %v275, %v274
    %v286 = vpack.c.b16 %v277, %v276
    %v287 = vpack.c.b16 %v279, %v278
    %296 = vmatpush.bf16.msra.mxu0 %v287
    %297 = vmatpush.bf16.msra.mxu0 %v286
    %298 = vmatpush.bf16.msra.mxu0 %v285
    %299 = vmatpush.bf16.msra.mxu0 %v284
    %300 = vmatpush.bf16.msra.mxu0 %v283
    %301 = vmatpush.bf16.msra.mxu0 %v282
    %302 = vmatpush.bf16.msra.mxu0 %v281
    %303 = vmatpush.bf16.msra.mxu0 %v280
    %304 = vmatmul.bf16.gmra.mxu0 %v220
    %v305 = vpop.f32.mrf.mxu0
    %v306 = vadd.f32 %v246, %v305
    %v307 = vpop.f32.mrf.mxu0
    %v308 = vadd.f32 %v246, %v307
    %309 = vmatmul.bf16.gmra.mxu0 %v221
    %v310 = vpop.f32.mrf.mxu0
    %v311 = vadd.f32 %v246, %v310
    %v312 = vpop.f32.mrf.mxu0
    %v313 = vadd.f32 %v246, %v312
    %314 = vmatmul.bf16.gmra.mxu0 %v222
    %v315 = vpop.f32.mrf.mxu0
    %v316 = vadd.f32 %v246, %v315
    %v317 = vpop.f32.mrf.mxu0
    %v318 = vadd.f32 %v246, %v317
    %319 = vmatmul.bf16.gmra.mxu0 %v223
    %v320 = vpop.f32.mrf.mxu0
    %v321 = vadd.f32 %v246, %v320
    %v322 = vpop.f32.mrf.mxu0
    %v323 = vadd.f32 %v246, %v322
    %324 = vmatmul.bf16.gmra.mxu0 %v224
    %v325 = vpop.f32.mrf.mxu0
    %v326 = vadd.f32 %v246, %v325
    %v327 = vpop.f32.mrf.mxu0
    %v328 = vadd.f32 %v246, %v327
    %329 = vmatmul.bf16.gmra.mxu0 %v225
    %v330 = vpop.f32.mrf.mxu0
    %v331 = vadd.f32 %v246, %v330
    %v332 = vpop.f32.mrf.mxu0
    %v333 = vadd.f32 %v246, %v332
    %334 = vmatmul.bf16.gmra.mxu0 %v226
    %v335 = vpop.f32.mrf.mxu0
    %v336 = vadd.f32 %v246, %v335
    %v337 = vpop.f32.mrf.mxu0
    %v338 = vadd.f32 %v246, %v337
    %339 = vmatmul.bf16.gmra.mxu0 %v227
    %v340 = vpop.f32.mrf.mxu0
    %v341 = vadd.f32 %v246, %v340
    %v342 = vpop.f32.mrf.mxu0
    %v343 = vadd.f32 %v246, %v342
    %344 = vdwg.mxu0
    %v345 = vmax.f32 %v306, 0.0
    %v346 = vmax.f32 %v308, 0.0
    %v347 = vmax.f32 %v311, 0.0
    %v348 = vmax.f32 %v313, 0.0
    %v349 = vmax.f32 %v316, 0.0
    %v350 = vmax.f32 %v318, 0.0
    %v351 = vmax.f32 %v321, 0.0
    %v352 = vmax.f32 %v323, 0.0
    %v353 = vmax.f32 %v326, 0.0
    %v354 = vmax.f32 %v328, 0.0
    %v355 = vmax.f32 %v331, 0.0
    %v356 = vmax.f32 %v333, 0.0
    %v357 = vmax.f32 %v336, 0.0
    %v358 = vmax.f32 %v338, 0.0
    %v359 = vmax.f32 %v341, 0.0
    %v360 = vmax.f32 %v343, 0.0
    %v361 = vpack.c.bf16 %v346, %v345
    %v362 = vpack.c.bf16 %v348, %v347
    %v363 = vpack.c.bf16 %v350, %v349
    %v364 = vpack.c.bf16 %v352, %v351
    %v365 = vpack.c.bf16 %v354, %v353
    %v366 = vpack.c.bf16 %v356, %v355
    %v367 = vpack.c.bf16 %v358, %v357
    %v368 = vpack.c.bf16 %v360, %v359
    %v369 = vld [vmem:[#allocation2] sm:$0xff]
    %v370 = vld [vmem:[#allocation2 + $0x8] sm:$0xff]
    %v371 = vld [vmem:[#allocation2 + $0x10] sm:$0xff]
    %v372 = vld [vmem:[#allocation2 + $0x18] sm:$0xff]
    %v373 = vld [vmem:[#allocation2 + $0x20] sm:$0xff]
    %v374 = vld [vmem:[#allocation2 + $0x28] sm:$0xff]
    %v375 = vld [vmem:[#allocation2 + $0x30] sm:$0xff]
    %v376 = vld [vmem:[#allocation2 + $0x38] sm:$0xff]
    %v377 = vld [vmem:[#allocation2 + $0x40] sm:$0xff]
    %v378 = vld [vmem:[#allocation2 + $0x48] sm:$0xff]
    %v379 = vld [vmem:[#allocation2 + $0x50] sm:$0xff]
    %v380 = vld [vmem:[#allocation2 + $0x58] sm:$0xff]
    %v381 = vld [vmem:[#allocation2 + $0x60] sm:$0xff]
    %v382 = vld [vmem:[#allocation2 + $0x68] sm:$0xff]
    %v383 = vld [vmem:[#allocation2 + $0x70] sm:$0xff]
    %v384 = vld [vmem:[#allocation2 + $0x78] sm:$0xff]
    %v385 = vld [vmem:[%s6] sm:$0x3]
    %v387 = vperm.slane %v385, 0
    %v388 = vperm.slane %v385, 1
    %v407 = vunpack.c.l.b16 %v369
    %v408 = vunpack.c.h.b16 %v369
    %v409 = vunpack.c.l.b16 %v370
    %v410 = vunpack.c.h.b16 %v370
    %v411 = vunpack.c.l.b16 %v371
    %v412 = vunpack.c.h.b16 %v371
    %v413 = vunpack.c.l.b16 %v372
    %v414 = vunpack.c.h.b16 %v372
    %v415 = vunpack.c.l.b16 %v373
    %v416 = vunpack.c.h.b16 %v373
    %v417 = vunpack.c.l.b16 %v374
    %v418 = vunpack.c.h.b16 %v374
    %v419 = vunpack.c.l.b16 %v375
    %v420 = vunpack.c.h.b16 %v375
    %v421 = vunpack.c.l.b16 %v376
    %v422 = vunpack.c.h.b16 %v376
    %v423 = vunpack.c.l.b16 %v377
    %v424 = vunpack.c.h.b16 %v377
    %v425 = vunpack.c.l.b16 %v378
    %v426 = vunpack.c.h.b16 %v378
    %v427 = vunpack.c.l.b16 %v379
    %v428 = vunpack.c.h.b16 %v379
    %v429 = vunpack.c.l.b16 %v380
    %v430 = vunpack.c.h.b16 %v380
    %v431 = vunpack.c.l.b16 %v381
    %v432 = vunpack.c.h.b16 %v381
    %v433 = vunpack.c.l.b16 %v382
    %v434 = vunpack.c.h.b16 %v382
    %v435 = vunpack.c.l.b16 %v383
    %v436 = vunpack.c.h.b16 %v383
    %v437 = vunpack.c.l.b16 %v384
    %v438 = vunpack.c.h.b16 %v384
    %v439 = vpack.c.b16 %v409, %v407
    %v440 = vpack.c.b16 %v410, %v408
    %v441 = vpack.c.b16 %v413, %v411
    %v442 = vpack.c.b16 %v414, %v412
    %v443 = vpack.c.b16 %v417, %v415
    %v444 = vpack.c.b16 %v418, %v416
    %v445 = vpack.c.b16 %v421, %v419
    %v446 = vpack.c.b16 %v422, %v420
    %v447 = vpack.c.b16 %v425, %v423
    %v448 = vpack.c.b16 %v426, %v424
    %v449 = vpack.c.b16 %v429, %v427
    %v450 = vpack.c.b16 %v430, %v428
    %v451 = vpack.c.b16 %v433, %v431
    %v452 = vpack.c.b16 %v434, %v432
    %v453 = vpack.c.b16 %v437, %v435
    %v454 = vpack.c.b16 %v438, %v436
    %471 = vmatpush.bf16.msra.mxu0 %v453
    %472 = vmatpush.bf16.msra.mxu0 %v451
    %473 = vmatpush.bf16.msra.mxu0 %v449
    %474 = vmatpush.bf16.msra.mxu0 %v447
    %475 = vmatpush.bf16.msra.mxu0 %v445
    %476 = vmatpush.bf16.msra.mxu0 %v443
    %477 = vmatpush.bf16.msra.mxu0 %v441
    %478 = vmatpush.bf16.msra.mxu0 %v439
    %479 = vmatmul.bf16.gmra.mxu0 %v361
    %v480 = vpop.f32.mrf.mxu0
    %v481 = vadd.f32 %v387, %v480
    %v482 = vpop.f32.mrf.mxu0
    %v483 = vadd.f32 %v387, %v482
    %484 = vmatmul.bf16.gmra.mxu0 %v362
    %v485 = vpop.f32.mrf.mxu0
    %v486 = vadd.f32 %v387, %v485
    %v487 = vpop.f32.mrf.mxu0
    %v488 = vadd.f32 %v387, %v487
    %489 = vmatmul.bf16.gmra.mxu0 %v363
    %v490 = vpop.f32.mrf.mxu0
    %v491 = vadd.f32 %v387, %v490
    %v492 = vpop.f32.mrf.mxu0
    %v493 = vadd.f32 %v387, %v492
    %494 = vmatmul.bf16.gmra.mxu0 %v364
    %v495 = vpop.f32.mrf.mxu0
    %v496 = vadd.f32 %v387, %v495
    %v497 = vpop.f32.mrf.mxu0
    %v498 = vadd.f32 %v387, %v497
    %499 = vmatmul.bf16.gmra.mxu0 %v365
    %v500 = vpop.f32.mrf.mxu0
    %v501 = vadd.f32 %v387, %v500
    %v502 = vpop.f32.mrf.mxu0
    %v503 = vadd.f32 %v387, %v502
    %504 = vmatmul.bf16.gmra.mxu0 %v366
    %v505 = vpop.f32.mrf.mxu0
    %v506 = vadd.f32 %v387, %v505
    %v507 = vpop.f32.mrf.mxu0
    %v508 = vadd.f32 %v387, %v507
    %509 = vmatmul.bf16.gmra.mxu0 %v367
    %v510 = vpop.f32.mrf.mxu0
    %v511 = vadd.f32 %v387, %v510
    %v512 = vpop.f32.mrf.mxu0
    %v513 = vadd.f32 %v387, %v512
    %514 = vmatmul.bf16.gmra.mxu0 %v368
    %v515 = vpop.f32.mrf.mxu0
    %v516 = vadd.f32 %v387, %v515
    %v517 = vpop.f32.mrf.mxu0
    %v518 = vadd.f32 %v387, %v517
    %519 = vdwg.mxu0
    %520 = vmatpush.bf16.msra.mxu0 %v454
    %521 = vmatpush.bf16.msra.mxu0 %v452
    %522 = vmatpush.bf16.msra.mxu0 %v450
    %523 = vmatpush.bf16.msra.mxu0 %v448
    %524 = vmatpush.bf16.msra.mxu0 %v446
    %525 = vmatpush.bf16.msra.mxu0 %v444
    %526 = vmatpush.bf16.msra.mxu0 %v442
    %527 = vmatpush.bf16.msra.mxu0 %v440
    %528 = vmatmul.bf16.gmra.mxu0 %v361
    %v529 = vpop.f32.mrf.mxu0
    %v530 = vadd.f32 %v388, %v529
    %v531 = vpop.f32.mrf.mxu0
    %v532 = vadd.f32 %v388, %v531
    %533 = vmatmul.bf16.gmra.mxu0 %v362
    %v534 = vpop.f32.mrf.mxu0
    %v535 = vadd.f32 %v388, %v534
    %v536 = vpop.f32.mrf.mxu0
    %v537 = vadd.f32 %v388, %v536
    %538 = vmatmul.bf16.gmra.mxu0 %v363
    %v539 = vpop.f32.mrf.mxu0
    %v540 = vadd.f32 %v388, %v539
    %v541 = vpop.f32.mrf.mxu0
    %v542 = vadd.f32 %v388, %v541
    %543 = vmatmul.bf16.gmra.mxu0 %v364
    %v544 = vpop.f32.mrf.mxu0
    %v545 = vadd.f32 %v388, %v544
    %v546 = vpop.f32.mrf.mxu0
    %v547 = vadd.f32 %v388, %v546
    %548 = vmatmul.bf16.gmra.mxu0 %v365
    %v549 = vpop.f32.mrf.mxu0
    %v550 = vadd.f32 %v388, %v549
    %v551 = vpop.f32.mrf.mxu0
    %v552 = vadd.f32 %v388, %v551
    %553 = vmatmul.bf16.gmra.mxu0 %v366
    %v554 = vpop.f32.mrf.mxu0
    %v555 = vadd.f32 %v388, %v554
    %v556 = vpop.f32.mrf.mxu0
    %v557 = vadd.f32 %v388, %v556
    %558 = vmatmul.bf16.gmra.mxu0 %v367
    %v559 = vpop.f32.mrf.mxu0
    %v560 = vadd.f32 %v388, %v559
    %v561 = vpop.f32.mrf.mxu0
    %v562 = vadd.f32 %v388, %v561
    %563 = vmatmul.bf16.gmra.mxu0 %v368
    %v564 = vpop.f32.mrf.mxu0
    %v565 = vadd.f32 %v388, %v564
    %v566 = vpop.f32.mrf.mxu0
    %v567 = vadd.f32 %v388, %v566
    %568 = vdwg.mxu0
    %v569 = vmax.f32 %v481, 0.0
    %v570 = vmax.f32 %v530, 0.0
    %v571 = vmax.f32 %v483, 0.0
    %v572 = vmax.f32 %v532, 0.0
    %v573 = vmax.f32 %v486, 0.0
    %v574 = vmax.f32 %v535, 0.0
    %v575 = vmax.f32 %v488, 0.0
    %v576 = vmax.f32 %v537, 0.0
    %v577 = vmax.f32 %v491, 0.0
    %v578 = vmax.f32 %v540, 0.0
    %v579 = vmax.f32 %v493, 0.0
    %v580 = vmax.f32 %v542, 0.0
    %v581 = vmax.f32 %v496, 0.0
    %v582 = vmax.f32 %v545, 0.0
    %v583 = vmax.f32 %v498, 0.0
    %v584 = vmax.f32 %v547, 0.0
    %v585 = vmax.f32 %v501, 0.0
    %v586 = vmax.f32 %v550, 0.0
    %v587 = vmax.f32 %v503, 0.0
    %v588 = vmax.f32 %v552, 0.0
    %v589 = vmax.f32 %v506, 0.0
    %v590 = vmax.f32 %v555, 0.0
    %v591 = vmax.f32 %v508, 0.0
    %v592 = vmax.f32 %v557, 0.0
    %v593 = vmax.f32 %v511, 0.0
    %v594 = vmax.f32 %v560, 0.0
    %v595 = vmax.f32 %v513, 0.0
    %v596 = vmax.f32 %v562, 0.0
    %v597 = vmax.f32 %v516, 0.0
    %v598 = vmax.f32 %v565, 0.0
    %v599 = vmax.f32 %v518, 0.0
    %v600 = vmax.f32 %v567, 0.0
    %v601 = vpack.c.bf16 %v571, %v569
    %v602 = vpack.c.bf16 %v572, %v570
    %v603 = vpack.c.bf16 %v575, %v573
    %v604 = vpack.c.bf16 %v576, %v574
    %v605 = vpack.c.bf16 %v579, %v577
    %v606 = vpack.c.bf16 %v580, %v578
    %v607 = vpack.c.bf16 %v583, %v581
    %v608 = vpack.c.bf16 %v584, %v582
    %v609 = vpack.c.bf16 %v587, %v585
    %v610 = vpack.c.bf16 %v588, %v586
    %v611 = vpack.c.bf16 %v591, %v589
    %v612 = vpack.c.bf16 %v592, %v590
    %v613 = vpack.c.bf16 %v595, %v593
    %v614 = vpack.c.bf16 %v596, %v594
    %v615 = vpack.c.bf16 %v599, %v597
    %v616 = vpack.c.bf16 %v600, %v598
    %v617 = vld [vmem:[#allocation4] sm:$0xf]
    %v618 = vld [vmem:[#allocation4 + $0x4] sm:$0xf]
    %v619 = vld [vmem:[#allocation4 + $0x8] sm:$0xf]
    %v620 = vld [vmem:[#allocation4 + $0xc] sm:$0xf]
    %v621 = vld [vmem:[#allocation4 + $0x10] sm:$0xf]
    %v622 = vld [vmem:[#allocation4 + $0x14] sm:$0xf]
    %v623 = vld [vmem:[#allocation4 + $0x18] sm:$0xf]
    %v624 = vld [vmem:[#allocation4 + $0x1c] sm:$0xf]
    %v625 = vld [vmem:[#allocation4 + $0x20] sm:$0xf]
    %v626 = vld [vmem:[#allocation4 + $0x24] sm:$0xf]
    %v627 = vld [vmem:[#allocation4 + $0x28] sm:$0xf]
    %v628 = vld [vmem:[#allocation4 + $0x2c] sm:$0xf]
    %v629 = vld [vmem:[#allocation4 + $0x30] sm:$0xf]
    %v630 = vld [vmem:[#allocation4 + $0x34] sm:$0xf]
    %v631 = vld [vmem:[#allocation4 + $0x38] sm:$0xf]
    %v632 = vld [vmem:[#allocation4 + $0x3c] sm:$0xf]
    %v633 = vld [vmem:[#allocation4 + $0x40] sm:$0xf]
    %v634 = vld [vmem:[#allocation4 + $0x44] sm:$0xf]
    %v635 = vld [vmem:[#allocation4 + $0x48] sm:$0xf]
    %v636 = vld [vmem:[#allocation4 + $0x4c] sm:$0xf]
    %v637 = vld [vmem:[#allocation4 + $0x50] sm:$0xf]
    %v638 = vld [vmem:[#allocation4 + $0x54] sm:$0xf]
    %v639 = vld [vmem:[#allocation4 + $0x58] sm:$0xf]
    %v640 = vld [vmem:[#allocation4 + $0x5c] sm:$0xf]
    %v641 = vld [vmem:[#allocation4 + $0x60] sm:$0xf]
    %v642 = vld [vmem:[#allocation4 + $0x64] sm:$0xf]
    %v643 = vld [vmem:[#allocation4 + $0x68] sm:$0xf]
    %v644 = vld [vmem:[#allocation4 + $0x6c] sm:$0xf]
    %v645 = vld [vmem:[#allocation4 + $0x70] sm:$0xf]
    %v646 = vld [vmem:[#allocation4 + $0x74] sm:$0xf]
    %v647 = vld [vmem:[#allocation4 + $0x78] sm:$0xf]
    %v648 = vld [vmem:[#allocation4 + $0x7c] sm:$0xf]
    %v649 = vld [vmem:[%s8] sm:$0x1]
    %v651 = vperm.slane %v649, 0
    %v685 = vunpack.c.l.b16 %v617
    %v686 = vunpack.c.l.b16 %v618
    %v687 = vunpack.c.l.b16 %v619
    %v688 = vunpack.c.l.b16 %v620
    %v689 = vunpack.c.l.b16 %v621
    %v690 = vunpack.c.l.b16 %v622
    %v691 = vunpack.c.l.b16 %v623
    %v692 = vunpack.c.l.b16 %v624
    %v693 = vunpack.c.l.b16 %v625
    %v694 = vunpack.c.l.b16 %v626
    %v695 = vunpack.c.l.b16 %v627
    %v696 = vunpack.c.l.b16 %v628
    %v697 = vunpack.c.l.b16 %v629
    %v698 = vunpack.c.l.b16 %v630
    %v699 = vunpack.c.l.b16 %v631
    %v700 = vunpack.c.l.b16 %v632
    %v701 = vunpack.c.l.b16 %v633
    %v702 = vunpack.c.l.b16 %v634
    %v703 = vunpack.c.l.b16 %v635
    %v704 = vunpack.c.l.b16 %v636
    %v705 = vunpack.c.l.b16 %v637
    %v706 = vunpack.c.l.b16 %v638
    %v707 = vunpack.c.l.b16 %v639
    %v708 = vunpack.c.l.b16 %v640
    %v709 = vunpack.c.l.b16 %v641
    %v710 = vunpack.c.l.b16 %v642
    %v711 = vunpack.c.l.b16 %v643
    %v712 = vunpack.c.l.b16 %v644
    %v713 = vunpack.c.l.b16 %v645
    %v714 = vunpack.c.l.b16 %v646
    %v715 = vunpack.c.l.b16 %v647
    %v716 = vunpack.c.l.b16 %v648
    %v717 = vpack.c.b16 %v686, %v685
    %v718 = vpack.c.b16 %v688, %v687
    %v719 = vpack.c.b16 %v690, %v689
    %v720 = vpack.c.b16 %v692, %v691
    %v721 = vpack.c.b16 %v694, %v693
    %v722 = vpack.c.b16 %v696, %v695
    %v723 = vpack.c.b16 %v698, %v697
    %v724 = vpack.c.b16 %v700, %v699
    %v725 = vpack.c.b16 %v702, %v701
    %v726 = vpack.c.b16 %v704, %v703
    %v727 = vpack.c.b16 %v706, %v705
    %v728 = vpack.c.b16 %v708, %v707
    %v729 = vpack.c.b16 %v710, %v709
    %v730 = vpack.c.b16 %v712, %v711
    %v731 = vpack.c.b16 %v714, %v713
    %v732 = vpack.c.b16 %v716, %v715
    %749 = vmatpush.bf16.msra.mxu0 %v724
    %750 = vmatpush.bf16.msra.mxu0 %v723
    %751 = vmatpush.bf16.msra.mxu0 %v722
    %752 = vmatpush.bf16.msra.mxu0 %v721
    %753 = vmatpush.bf16.msra.mxu0 %v720
    %754 = vmatpush.bf16.msra.mxu0 %v719
    %755 = vmatpush.bf16.msra.mxu0 %v718
    %756 = vmatpush.bf16.msra.mxu0 %v717
    %757 = vmatmul.bf16.gmra.mxu0 %v601
    %v758 = vpop.f32.mrf.mxu0
    %v759 = vadd.f32 %v651, %v758
    %v760 = vpop.f32.mrf.mxu0
    %v761 = vadd.f32 %v651, %v760
    %762 = vmatmul.bf16.gmra.mxu0 %v603
    %v763 = vpop.f32.mrf.mxu0
    %v764 = vadd.f32 %v651, %v763
    %v765 = vpop.f32.mrf.mxu0
    %v766 = vadd.f32 %v651, %v765
    %767 = vmatmul.bf16.gmra.mxu0 %v605
    %v768 = vpop.f32.mrf.mxu0
    %v769 = vadd.f32 %v651, %v768
    %v770 = vpop.f32.mrf.mxu0
    %v771 = vadd.f32 %v651, %v770
    %772 = vmatmul.bf16.gmra.mxu0 %v607
    %v773 = vpop.f32.mrf.mxu0
    %v774 = vadd.f32 %v651, %v773
    %v775 = vpop.f32.mrf.mxu0
    %v776 = vadd.f32 %v651, %v775
    %777 = vmatmul.bf16.gmra.mxu0 %v609
    %v778 = vpop.f32.mrf.mxu0
    %v779 = vadd.f32 %v651, %v778
    %v780 = vpop.f32.mrf.mxu0
    %v781 = vadd.f32 %v651, %v780
    %782 = vmatmul.bf16.gmra.mxu0 %v611
    %v783 = vpop.f32.mrf.mxu0
    %v784 = vadd.f32 %v651, %v783
    %v785 = vpop.f32.mrf.mxu0
    %v786 = vadd.f32 %v651, %v785
    %787 = vmatmul.bf16.gmra.mxu0 %v613
    %v788 = vpop.f32.mrf.mxu0
    %v789 = vadd.f32 %v651, %v788
    %v790 = vpop.f32.mrf.mxu0
    %v791 = vadd.f32 %v651, %v790
    %792 = vmatmul.bf16.gmra.mxu0 %v615
    %v793 = vpop.f32.mrf.mxu0
    %v794 = vadd.f32 %v651, %v793
    %v795 = vpop.f32.mrf.mxu0
    %v796 = vadd.f32 %v651, %v795
    %797 = vdwg.mxu0
    %798 = vmatpush.bf16.msra.mxu0 %v732
    %799 = vmatpush.bf16.msra.mxu0 %v731
    %800 = vmatpush.bf16.msra.mxu0 %v730
    %801 = vmatpush.bf16.msra.mxu0 %v729
    %802 = vmatpush.bf16.msra.mxu0 %v728
    %803 = vmatpush.bf16.msra.mxu0 %v727
    %804 = vmatpush.bf16.msra.mxu0 %v726
    %805 = vmatpush.bf16.msra.mxu0 %v725
    %806 = vmatmul.bf16.gmra.mxu0 %v602
    %v807 = vpop.f32.mrf.mxu0
    %v808 = vadd.f32 %v759, %v807
    %v809 = vpop.f32.mrf.mxu0
    %v810 = vadd.f32 %v761, %v809
    %811 = vmatmul.bf16.gmra.mxu0 %v604
    %v812 = vpop.f32.mrf.mxu0
    %v813 = vadd.f32 %v764, %v812
    %v814 = vpop.f32.mrf.mxu0
    %v815 = vadd.f32 %v766, %v814
    %816 = vmatmul.bf16.gmra.mxu0 %v606
    %v817 = vpop.f32.mrf.mxu0
    %v818 = vadd.f32 %v769, %v817
    %v819 = vpop.f32.mrf.mxu0
    %v820 = vadd.f32 %v771, %v819
    %821 = vmatmul.bf16.gmra.mxu0 %v608
    %v822 = vpop.f32.mrf.mxu0
    %v823 = vadd.f32 %v774, %v822
    %v824 = vpop.f32.mrf.mxu0
    %v825 = vadd.f32 %v776, %v824
    %826 = vmatmul.bf16.gmra.mxu0 %v610
    %v827 = vpop.f32.mrf.mxu0
    %v828 = vadd.f32 %v779, %v827
    %v829 = vpop.f32.mrf.mxu0
    %v830 = vadd.f32 %v781, %v829
    %831 = vmatmul.bf16.gmra.mxu0 %v612
    %v832 = vpop.f32.mrf.mxu0
    %v833 = vadd.f32 %v784, %v832
    %v834 = vpop.f32.mrf.mxu0
    %v835 = vadd.f32 %v786, %v834
    %836 = vmatmul.bf16.gmra.mxu0 %v614
    %v837 = vpop.f32.mrf.mxu0
    %v838 = vadd.f32 %v789, %v837
    %v839 = vpop.f32.mrf.mxu0
    %v840 = vadd.f32 %v791, %v839
    %841 = vmatmul.bf16.gmra.mxu0 %v616
    %v842 = vpop.f32.mrf.mxu0
    %v843 = vadd.f32 %v794, %v842
    %v844 = vpop.f32.mrf.mxu0
    %v845 = vadd.f32 %v796, %v844
    %846 = vdwg.mxu0
    %v847 = vadd.f32 %v808, %v810
    %v848 = vadd.f32 %v847, %v813
    %v849 = vadd.f32 %v848, %v815
    %v850 = vadd.f32 %v849, %v818
    %v851 = vadd.f32 %v850, %v820
    %v852 = vadd.f32 %v851, %v823
    %v853 = vadd.f32 %v852, %v825
    %v854 = vadd.f32 %v853, %v828
    %v855 = vadd.f32 %v854, %v830
    %v856 = vadd.f32 %v855, %v833
    %v857 = vadd.f32 %v856, %v835
    %v858 = vadd.f32 %v857, %v838
    %v859 = vadd.f32 %v858, %v840
    %v860 = vadd.f32 %v859, %v843
    %v861 = vadd.f32 %v860, %v845
    %862 = vadd.xlane.f32.xlu0 %v861
    %v863 = vpop.xlane.xlu0 %862
    %v864 = vrot.slane %v863, 4
    %v865 = vadd.f32 %v863, %v864
    %v866 = vrot.slane %v865, 2
    %v867 = vadd.f32 %v865, %v866
    %v868 = vrot.slane %v867, 1
    %v869 = vadd.f32 %v867, %v868
    %s870 = vtos %v869
    %887 = vrot.lane.b32.xlu0 %v808, 124
    %v888 = vpop.permute.xlu0 %887
    %889 = vrot.lane.b32.xlu0 %v810, 124
    %v890 = vpop.permute.xlu0 %889
    %891 = vrot.lane.b32.xlu0 %v813, 124
    %v892 = vpop.permute.xlu0 %891
    %893 = vrot.lane.b32.xlu0 %v815, 124
    %v894 = vpop.permute.xlu0 %893
    %895 = vrot.lane.b32.xlu0 %v818, 124
    %v896 = vpop.permute.xlu0 %895
    %897 = vrot.lane.b32.xlu0 %v820, 124
    %v898 = vpop.permute.xlu0 %897
    %899 = vrot.lane.b32.xlu0 %v823, 124
    %v900 = vpop.permute.xlu0 %899
    %901 = vrot.lane.b32.xlu0 %v825, 124
    %v902 = vpop.permute.xlu0 %901
    %903 = vrot.lane.b32.xlu0 %v828, 124
    %v904 = vpop.permute.xlu0 %903
    %905 = vrot.lane.b32.xlu0 %v830, 124
    %v906 = vpop.permute.xlu0 %905
    %907 = vrot.lane.b32.xlu0 %v833, 124
    %v908 = vpop.permute.xlu0 %907
    %909 = vrot.lane.b32.xlu0 %v835, 124
    %v910 = vpop.permute.xlu0 %909
    %911 = vrot.lane.b32.xlu0 %v838, 124
    %v912 = vpop.permute.xlu0 %911
    %913 = vrot.lane.b32.xlu0 %v840, 124
    %v914 = vpop.permute.xlu0 %913
    %915 = vrot.lane.b32.xlu0 %v843, 124
    %v916 = vpop.permute.xlu0 %915
    %917 = vrot.lane.b32.xlu0 %v845, 124
    %v918 = vpop.permute.xlu0 %917
    %vm935 = vcmask 7168
    %v936 = vsel %vm935, %v888, 0.0
    %v937 = vsel %vm935, %v890, 0.0
    %v938 = vadd.f32 %v936, %v937
    %v939 = vsel %vm935, %v892, 0.0
    %v940 = vadd.f32 %v938, %v939
    %v941 = vsel %vm935, %v894, 0.0
    %v942 = vadd.f32 %v940, %v941
    %v943 = vsel %vm935, %v896, 0.0
    %v944 = vadd.f32 %v942, %v943
    %v945 = vsel %vm935, %v898, 0.0
    %v946 = vadd.f32 %v944, %v945
    %v947 = vsel %vm935, %v900, 0.0
    %v948 = vadd.f32 %v946, %v947
    %v949 = vsel %vm935, %v902, 0.0
    %v950 = vadd.f32 %v948, %v949
    %v951 = vsel %vm935, %v904, 0.0
    %v952 = vadd.f32 %v950, %v951
    %v953 = vsel %vm935, %v906, 0.0
    %v954 = vadd.f32 %v952, %v953
    %v955 = vsel %vm935, %v908, 0.0
    %v956 = vadd.f32 %v954, %v955
    %v957 = vsel %vm935, %v910, 0.0
    %v958 = vadd.f32 %v956, %v957
    %v959 = vsel %vm935, %v912, 0.0
    %v960 = vadd.f32 %v958, %v959
    %v961 = vsel %vm935, %v914, 0.0
    %v962 = vadd.f32 %v960, %v961
    %v963 = vsel %vm935, %v916, 0.0
    %v964 = vadd.f32 %v962, %v963
    %v965 = vsel %vm935, %v918, 0.0
    %v966 = vadd.f32 %v964, %v965
    %967 = vadd.xlane.f32.xlu0 %v966
    %v968 = vpop.xlane.xlu0 %967
    %v969 = vrot.slane %v968, 4
    %v970 = vadd.f32 %v968, %v969
    %v971 = vrot.slane %v970, 2
    %v972 = vadd.f32 %v970, %v971
    %v973 = vrot.slane %v972, 1
    %v974 = vadd.f32 %v972, %v973
    %s975 = vtos %v974
    %s976 = ssub.f32 %s870, %s975
    %v977 = vrcp.pop 512.0
    %v978 = vmul.f32 512.0, %v977
    %v979 = vsub.f32 1.0, %v978
    %v980 = vmul.f32 %v977, %v979
    %v981 = vadd.f32 %v977, %v980
    %vm982 = vweird.f32 %v977
    %v983 = vsel %vm982, %v977, %v981
    %s984 = vtos %v983
    %s985 = smul.f32 %s976, %s984
    %v986 = vstv %s985
    %v987 = vsub.f32 %v808, %v986
    %v988 = vsub.f32 %v810, %v986
    %v989 = vsub.f32 %v813, %v986
    %v990 = vsub.f32 %v815, %v986
    %v991 = vsub.f32 %v818, %v986
    %v992 = vsub.f32 %v820, %v986
    %v993 = vsub.f32 %v823, %v986
    %v994 = vsub.f32 %v825, %v986
    %v995 = vsub.f32 %v828, %v986
    %v996 = vsub.f32 %v830, %v986
    %v997 = vsub.f32 %v833, %v986
    %v998 = vsub.f32 %v835, %v986
    %v999 = vsub.f32 %v838, %v986
    %v1000 = vsub.f32 %v840, %v986
    %v1001 = vsub.f32 %v843, %v986
    %v1002 = vsub.f32 %v845, %v986
    %1004 = vset.pattern.permute.xlu0 4
    %1005 = vperm.xlu0 %1004, %v987
    %v1006 = vpop.permute.xlu0 %1005
    %1009 = vset.pattern.permute.xlu0 4
    %1010 = vperm.xlu0 %1009, %v988
    %v1011 = vpop.permute.xlu0 %1010
    %1014 = vset.pattern.permute.xlu0 4
    %1015 = vperm.xlu0 %1014, %v989
    %v1016 = vpop.permute.xlu0 %1015
    %1019 = vset.pattern.permute.xlu0 4
    %1020 = vperm.xlu0 %1019, %v990
    %v1021 = vpop.permute.xlu0 %1020
    %1024 = vset.pattern.permute.xlu0 4
    %1025 = vperm.xlu0 %1024, %v991
    %v1026 = vpop.permute.xlu0 %1025
    %1029 = vset.pattern.permute.xlu0 4
    %1030 = vperm.xlu0 %1029, %v992
    %v1031 = vpop.permute.xlu0 %1030
    %1034 = vset.pattern.permute.xlu0 4
    %1035 = vperm.xlu0 %1034, %v993
    %v1036 = vpop.permute.xlu0 %1035
    %1039 = vset.pattern.permute.xlu0 4
    %1040 = vperm.xlu0 %1039, %v994
    %v1041 = vpop.permute.xlu0 %1040
    %1044 = vset.pattern.permute.xlu0 4
    %1045 = vperm.xlu0 %1044, %v995
    %v1046 = vpop.permute.xlu0 %1045
    %1049 = vset.pattern.permute.xlu0 4
    %1050 = vperm.xlu0 %1049, %v996
    %v1051 = vpop.permute.xlu0 %1050
    %1054 = vset.pattern.permute.xlu0 4
    %1055 = vperm.xlu0 %1054, %v997
    %v1056 = vpop.permute.xlu0 %1055
    %1059 = vset.pattern.permute.xlu0 4
    %1060 = vperm.xlu0 %1059, %v998
    %v1061 = vpop.permute.xlu0 %1060
    %1064 = vset.pattern.permute.xlu0 4
    %1065 = vperm.xlu0 %1064, %v999
    %v1066 = vpop.permute.xlu0 %1065
    %1069 = vset.pattern.permute.xlu0 4
    %1070 = vperm.xlu0 %1069, %v1000
    %v1071 = vpop.permute.xlu0 %1070
    %1074 = vset.pattern.permute.xlu0 4
    %1075 = vperm.xlu0 %1074, %v1001
    %v1076 = vpop.permute.xlu0 %1075
    %1079 = vset.pattern.permute.xlu0 4
    %1080 = vperm.xlu0 %1079, %v1002
    %v1081 = vpop.permute.xlu0 %1080
    %v1083 = vadd.f32 %v808, %v1006
    %v1084 = vadd.f32 %v810, %v1011
    %v1085 = vadd.f32 %v813, %v1016
    %v1086 = vadd.f32 %v815, %v1021
    %v1087 = vadd.f32 %v818, %v1026
    %v1088 = vadd.f32 %v820, %v1031
    %v1089 = vadd.f32 %v823, %v1036
    %v1090 = vadd.f32 %v825, %v1041
    %v1091 = vadd.f32 %v828, %v1046
    %v1092 = vadd.f32 %v830, %v1051
    %v1093 = vadd.f32 %v833, %v1056
    %v1094 = vadd.f32 %v835, %v1061
    %v1095 = vadd.f32 %v838, %v1066
    %v1096 = vadd.f32 %v840, %v1071
    %v1097 = vadd.f32 %v843, %v1076
    %v1098 = vadd.f32 %v845, %v1081
    %1099 = vst [vmem:[%s9] sm:$0xff] %v1083
    %1100 = vst [vmem:[%s9 + $0x8] sm:$0xff] %v1084
    %1101 = vst [vmem:[%s9 + $0x10] sm:$0xff] %v1085
    %1102 = vst [vmem:[%s9 + $0x18] sm:$0xff] %v1086
    %1103 = vst [vmem:[%s9 + $0x20] sm:$0xff] %v1087
    %1104 = vst [vmem:[%s9 + $0x28] sm:$0xff] %v1088
    %1105 = vst [vmem:[%s9 + $0x30] sm:$0xff] %v1089
    %1106 = vst [vmem:[%s9 + $0x38] sm:$0xff] %v1090
    %1107 = vst [vmem:[%s9 + $0x40] sm:$0xff] %v1091
    %1108 = vst [vmem:[%s9 + $0x48] sm:$0xff] %v1092
    %1109 = vst [vmem:[%s9 + $0x50] sm:$0xff] %v1093
    %1110 = vst [vmem:[%s9 + $0x58] sm:$0xff] %v1094
    %1111 = vst [vmem:[%s9 + $0x60] sm:$0xff] %v1095
    %1112 = vst [vmem:[%s9 + $0x68] sm:$0xff] %v1096
    %1113 = vst [vmem:[%s9 + $0x70] sm:$0xff] %v1097
    %1114 = vst [vmem:[%s9 + $0x78] sm:$0xff] %v1098
    // Predicated region
    $region46: #{dueling_forward.1} parent=1 // pred_check
      _
    $region47: #{dueling_forward.1} parent=1 // pred_check_branch
      %1116 = sbr.rel (0) target = $region49
    $region48: #{dueling_forward.1} parent=1 // pred_region
      _
    $region49: #{dueling_forward.1} parent=1 // pred_fallthru
      _
    // Predicated region
    $region50: #{dueling_forward.1} parent=1 // pred_check
      _
    $region51: #{dueling_forward.1} parent=1 // pred_check_branch
      %1118 = sbr.rel (0) target = $region53
    $region52: #{dueling_forward.1} parent=1 // pred_region
      _
    $region53: #{dueling_forward.1} parent=1 // pred_fallthru
      _
    %1119 = vsyncpa [#allocation3], 1
    %1120 = vsyncpa [#allocation5], 1

</llo_original>
